<compile_context>
chip_gen: v5e
topology: v5e:2x2
jax: 0.10.0
libtpu: 0.0.40
codegen_flags: <defaults>
</compile_context>

<pallas_src>
import jax
import jax.numpy as jnp
from jax.experimental import pallas as pl
from jax.experimental.pallas import tpu as pltpu


_DEFAULT_VMEM_BUDGET = 16 << 20  # fits v5e's 16 MiB default scoped VMEM


def _round_up(x, m):
    return (x + m - 1) // m * m


def _working_set_bytes(row_tile, vtot, h, table_bytes, table_bufs):
    """Rough per-TensorCore VMEM working set for a given row tile."""
    h_pad = _round_up(max(h, 128), 128)
    vtot_pad = _round_up(max(vtot, 128), 128)
    return (2 * row_tile * 128 * 4        # ids tile (lane-padded), double buffered
            + 2 * row_tile * h_pad * 4    # output tile (f32-equiv), double buffered
            + row_tile * vtot_pad * 2     # bf16 one-hot
            + row_tile * h_pad * 4        # f32 matmul accumulator
            + table_bufs * table_bytes)   # resident fused table


def _pick_row_tile(rows, vtot, h, table_bytes, vmem_budget):
    """Largest 8-multiple row tile that fits the VMEM budget AND yields >= 2
    grid steps (pipelining overlap + both v7x TensorCores busy)."""
    for t in (1024, 512, 256, 128, 64, 32, 16, 8):
        if pl.cdiv(rows, t) < 2:
            continue
        if _working_set_bytes(t, vtot, h, table_bytes, table_bufs=2) <= vmem_budget:
            return t
    return 8


def _row_col_emb_kernel(ids_ref, tab_ref, out_ref):
    # ids_ref: (TILE, 2) int32 — column 0: rows of table1, column 1: V1 + rows
    #                            of table2 (pre-offset in the wrapper).
    # tab_ref: (V1+V2, H)       — fused embedding table, VMEM resident.
    # out_ref: (TILE, H)        — output rows.
    ids = ids_ref[...]
    tile = ids.shape[0]
    vtot = tab_ref.shape[0]

    # Combined one-hot: one MXU matmul yields Emb1(ids1) + Emb2(ids2)
    # (hot columns never collide for valid indices).  Built in the table's
    # compute dtype (bf16 by default) — 0/1 entries keep the gather exact.
    iota = jax.lax.broadcasted_iota(jnp.int32, (tile, vtot), 1)
    hot = (iota == ids[:, 0:1]) | (iota == ids[:, 1:2])      # (TILE, Vtot) bool

    emb = jnp.dot(hot.astype(tab_ref.dtype), tab_ref[...],
                  preferred_element_type=jnp.float32)
    out_ref[...] = emb.astype(out_ref.dtype)


def fuse_embedding_tables(table1, table2, compute_dtype=jnp.bfloat16):
    """One-time model-init work (hoisted out of the forward wrapper): fuse the
    two embedding tables along the vocab axis and cast to the MXU compute
    dtype.  bf16 is the recommended fast path on v5e/v6e/v7x; pass
    jnp.float32 to preserve exact f32 module numerics."""
    assert table1.shape[1] == table2.shape[1]
    fused = jnp.concatenate([table1, table2], axis=0).astype(compute_dtype)
    return fused, table1.shape[0]


def _pallas_forward(ids, fused_table, row_tile, n_tiles, out_dtype, *,
                    single_buffer_table, vmem_limit_bytes=None):
    vtot, H = fused_table.shape
    padded_rows = n_tiles * row_tile

    table_spec_kwargs = {}
    if single_buffer_table:
        # Constant index_map keeps the fused table resident across grid steps;
        # Buffered(1) additionally drops the default 2x buffer allocation
        # (halves the table's scoped-VMEM cost — matters on v7x's 64 MiB VMEM,
        # harmless on v5e/v6e).
        table_spec_kwargs["pipeline_mode"] = pl.Buffered(1)
    table_spec = pl.BlockSpec((vtot, H), lambda i: (0, 0), **table_spec_kwargs)

    params = {"dimension_semantics": ("parallel",)}
    if vmem_limit_bytes is not None:
        params["vmem_limit_bytes"] = vmem_limit_bytes

    return pl.pallas_call(
        _row_col_emb_kernel,
        out_shape=jax.ShapeDtypeStruct((padded_rows, H), out_dtype),
        grid_spec=pltpu.PrefetchScalarGridSpec(
            num_scalar_prefetch=0,
            grid=(n_tiles,),
            in_specs=[
                pl.BlockSpec((row_tile, 2), lambda i: (i, 0)),  # pre-offset ids
                table_spec,                                      # resident table
            ],
            out_specs=pl.BlockSpec((row_tile, H), lambda i: (i, 0)),
        ),
        compiler_params=pltpu.CompilerParams(**params),
    )(ids, fused_table)


def row_column_embeddings(token_type_ids, fused_table, v1,
                          out_dtype=jnp.float32,
                          vmem_budget_bytes=_DEFAULT_VMEM_BUDGET):
    """token_type_ids: (B, S, C>=3) int; fused_table: (V1+V2, H) (from
    fuse_embedding_tables); v1: size of the first table's vocab."""
    B, S, C = token_type_ids.shape
    vtot, H = fused_table.shape
    rows = B * S

    # Wrapper-side id prep (cheap XLA ops): pre-slice the two index columns
    # and fold the +V1 offset for the second table into XLA -> dense (rows, 2)
    # int32 operand (smaller lane-padded ids tile, no in-kernel add).
    ids_all = token_type_ids.reshape(rows, C).astype(jnp.int32)
    ids = jnp.stack([ids_all[:, 1], ids_all[:, 2] + v1], axis=-1)

    table_bytes = vtot * H * fused_table.dtype.itemsize
    row_tile = _pick_row_tile(rows, vtot, H, table_bytes, vmem_budget_bytes)
    n_tiles = pl.cdiv(rows, row_tile)
    if n_tiles % 2:
        n_tiles += 1  # even tile count: v7x's two TensorCores get equal work
    padded_rows = n_tiles * row_tile
    if padded_rows != rows:
        # Pad rows index table1 row 0 (valid); they are sliced off below.
        ids = jnp.pad(ids, ((0, padded_rows - rows), (0, 0)))

    # Only raise the scoped-VMEM limit when the caller requested a working-set
    # budget above the smallest default (16 MiB on v5e) — e.g. 1024-row tiles
    # on v6e's 128 MiB VMEM.
    vmem_limit = None
    if vmem_budget_bytes > _DEFAULT_VMEM_BUDGET:
        vmem_limit = min(2 * vmem_budget_bytes, 100 << 20)

    try:
        out = _pallas_forward(ids, fused_table, row_tile, n_tiles, out_dtype,
                              single_buffer_table=True,
                              vmem_limit_bytes=vmem_limit)
    except Exception:
        # pl.Buffered(1) / pipeline_mode unsupported on this jax version:
        # fall back to default double-buffering (correct, just one extra
        # resident table copy in VMEM).
        out = _pallas_forward(ids, fused_table, row_tile, n_tiles, out_dtype,
                              single_buffer_table=False,
                              vmem_limit_bytes=vmem_limit)

    return out[:rows].reshape(B, S, H)


if __name__ == "__main__":
    # Config implied by the module: hidden_size=H, type_vocab_sizes[1]=V1,
    # type_vocab_sizes[2]=V2.
    B, S, H = 2, 8, 32
    V1, V2 = 16, 16

    key = jax.random.PRNGKey(0)
    k_ids, k_t1, k_t2 = jax.random.split(key, 3)

    # Deterministic parameter init (nn.Embedding default: N(0, 1)).
    table1 = jax.random.normal(k_t1, (V1, H), dtype=jnp.float32)
    table2 = jax.random.normal(k_t2, (V2, H), dtype=jnp.float32)

    # token_type_ids: column 1 indexes table1, column 2 indexes table2.
    col0 = jax.random.randint(k_ids, (B, S, 1), 0, 2, dtype=jnp.int32)
    col1 = jax.random.randint(jax.random.fold_in(k_ids, 1), (B, S, 1), 0, V1,
                              dtype=jnp.int32)
    col2 = jax.random.randint(jax.random.fold_in(k_ids, 2), (B, S, 1), 0, V2,
                              dtype=jnp.int32)
    token_type_ids = jnp.concatenate([col0, col1, col2], axis=-1)  # (B, S, 3)

    # One-time model init (hoisted out of the forward): fuse + bf16-cast.
    fused_table, v1 = fuse_embedding_tables(table1, table2,
                                            compute_dtype=jnp.bfloat16)

    out = row_column_embeddings(token_type_ids, fused_table, v1,
                                out_dtype=jnp.float32)
    out = jax.block_until_ready(out)

    # References.
    ids1 = token_type_ids[:, :, 1]
    ids2 = token_type_ids[:, :, 2]
    ref_f32 = table1[ids1] + table2[ids2]                 # exact f32 module math
    t1b = table1.astype(jnp.bfloat16).astype(jnp.float32)
    t2b = table2.astype(jnp.bfloat16).astype(jnp.float32)
    ref_bf16 = t1b[ids1] + t2b[ids2]                      # bf16-cast-table math

    assert out.shape == (B, S, H) and out.dtype == jnp.float32
    # The bf16 one-hot gather is exact w.r.t. the bf16-cast tables (f32 acc)...
    assert jnp.allclose(out, ref_bf16, atol=1e-5, rtol=1e-5)
    # ...and within bf16 rounding of the original f32 module semantics.
    assert jnp.allclose(out, ref_f32, atol=3e-2, rtol=2e-2)

    print("KERNEL_OK")
</pallas_src>

<mosaic_0001>
module attributes {stable_mosaic.version = 11 : i64} {
  func.func @_row_col_emb_kernel(%arg0: i32, %arg1: memref<8x2xi32, #tpu.memory_space<vmem>>, %arg2: memref<32x32xbf16, #tpu.memory_space<vmem>>, %arg3: memref<8x32xf32, #tpu.memory_space<vmem>>) attributes {dimension_semantics = [#tpu.dimension_semantics<parallel>], iteration_bounds = array<i64: 2>, scalar_prefetch = 0 : i64, scratch_operands = 0 : i64, tpu.core_type = #tpu.core_type<tc>, window_params = [{transform_indices = @transform_0, window_bounds = array<i64: 8, 2>}, {pipeline_mode = #tpu.pipeline_mode<synchronous>, transform_indices = @transform_1, window_bounds = array<i64: 32, 32>}, {transform_indices = @transform_2, window_bounds = array<i64: 8, 32>}]} {
    %c0 = arith.constant 0 : index
    %c0_0 = arith.constant 0 : index
    %0 = vector.load %arg1[%c0, %c0_0] : memref<8x2xi32, #tpu.memory_space<vmem>>, vector<8x2xi32>
    %1 = tpu.iota {dimensions = array<i32: 1>} : vector<8x32xi32>
    %2 = vector.extract_strided_slice %0 {offsets = [0, 0], sizes = [8, 1], strides = [1, 1]} : vector<8x2xi32> to vector<8x1xi32>
    %3 = vector.broadcast %2 : vector<8x1xi32> to vector<8x32xi32>
    %4 = arith.cmpi eq, %1, %3 : vector<8x32xi32>
    %5 = vector.extract_strided_slice %0 {offsets = [0, 1], sizes = [8, 1], strides = [1, 1]} : vector<8x2xi32> to vector<8x1xi32>
    %6 = vector.broadcast %5 : vector<8x1xi32> to vector<8x32xi32>
    %7 = arith.cmpi eq, %1, %6 : vector<8x32xi32>
    %8 = arith.ori %4, %7 : vector<8x32xi1>
    %9 = arith.extui %8 : vector<8x32xi1> to vector<8x32xi32>
    %10 = arith.sitofp %9 : vector<8x32xi32> to vector<8x32xf32>
    %11 = arith.truncf %10 : vector<8x32xf32> to vector<8x32xbf16>
    %c0_1 = arith.constant 0 : index
    %c0_2 = arith.constant 0 : index
    %12 = vector.load %arg2[%c0_1, %c0_2] : memref<32x32xbf16, #tpu.memory_space<vmem>>, vector<32x32xbf16>
    %cst = arith.constant dense<0.000000e+00> : vector<8x32xf32>
    %13 = tpu.matmul %11, %12, %cst {dimension_numbers = #tpu.dot_dimension_numbers<[1], [0], [0], [1], [0, 0, 1, 1], [], []>} : vector<8x32xbf16>, vector<32x32xbf16>, vector<8x32xf32> -> vector<8x32xf32>
    %c0_3 = arith.constant 0 : index
    %c0_4 = arith.constant 0 : index
    %14 = vector.load %arg3[%c0_3, %c0_4] : memref<8x32xf32, #tpu.memory_space<vmem>>, vector<8x32xf32>
    tpu.vector_store %arg3[%c0_3, %c0_4], %13 {strides = array<i32>} : memref<8x32xf32, #tpu.memory_space<vmem>>, vector<8x32xf32>,
    return
  }
  func.func @transform_0(%arg0: i32) -> (i32, i32) {
    %c0_i32 = arith.constant 0 : i32
    %c0_i32_0 = arith.constant 0 : i32
    return %arg0, %c0_i32 : i32, i32
  }
  func.func @transform_1(%arg0: i32) -> (i32, i32) {
    %c0_i32 = arith.constant 0 : i32
    %c0_i32_0 = arith.constant 0 : i32
    %c0_i32_1 = arith.constant 0 : i32
    return %c0_i32, %c0_i32_0 : i32, i32
  }
  func.func @transform_2(%arg0: i32) -> (i32, i32) {
    %c0_i32 = arith.constant 0 : i32
    %c0_i32_0 = arith.constant 0 : i32
    return %arg0, %c0_i32 : i32, i32
  }
}

module attributes {stable_mosaic.version = 11 : i64} {
  func.func @_row_col_emb_kernel(%arg0: i32, %arg1: memref<8x2xi32, #tpu.memory_space<vmem>>, %arg2: memref<32x32xbf16, #tpu.memory_space<vmem>>, %arg3: memref<8x32xf32, #tpu.memory_space<vmem>>) attributes {dimension_semantics = [#tpu.dimension_semantics<parallel>], iteration_bounds = array<i64: 2>, scalar_prefetch = 0 : i64, scratch_operands = 0 : i64, tpu.core_type = #tpu.core_type<tc>, window_params = [{transform_indices = @transform_0, window_bounds = array<i64: 8, 2>}, {pipeline_mode = #tpu.pipeline_mode<synchronous>, transform_indices = @transform_1, window_bounds = array<i64: 32, 32>}, {transform_indices = @transform_2, window_bounds = array<i64: 8, 32>}]} {
    %c0 = arith.constant 0 : index
    %c0_0 = arith.constant 0 : index
    %0 = vector.load %arg1[%c0, %c0_0] : memref<8x2xi32, #tpu.memory_space<vmem>>, vector<8x2xi32>
    %1 = tpu.iota {dimensions = array<i32: 1>} : vector<8x32xi32>
    %2 = vector.extract_strided_slice %0 {offsets = [0, 0], sizes = [8, 1], strides = [1, 1]} : vector<8x2xi32> to vector<8x1xi32>
    %3 = vector.broadcast %2 : vector<8x1xi32> to vector<8x32xi32>
    %4 = arith.cmpi eq, %1, %3 : vector<8x32xi32>
    %5 = vector.extract_strided_slice %0 {offsets = [0, 1], sizes = [8, 1], strides = [1, 1]} : vector<8x2xi32> to vector<8x1xi32>
    %6 = vector.broadcast %5 : vector<8x1xi32> to vector<8x32xi32>
    %7 = arith.cmpi eq, %1, %6 : vector<8x32xi32>
    %8 = arith.ori %4, %7 : vector<8x32xi1>
    %9 = arith.extui %8 : vector<8x32xi1> to vector<8x32xi32>
    %10 = arith.sitofp %9 : vector<8x32xi32> to vector<8x32xf32>
    %11 = arith.truncf %10 : vector<8x32xf32> to vector<8x32xbf16>
    %c0_1 = arith.constant 0 : index
    %c0_2 = arith.constant 0 : index
    %12 = vector.load %arg2[%c0_1, %c0_2] : memref<32x32xbf16, #tpu.memory_space<vmem>>, vector<32x32xbf16>
    %cst = arith.constant dense<0.000000e+00> : vector<8x32xf32>
    %13 = tpu.matmul %11, %12, %cst {dimension_numbers = #tpu.dot_dimension_numbers<[1], [0], [0], [1], [0, 0, 1, 1], [], []>} : vector<8x32xbf16>, vector<32x32xbf16>, vector<8x32xf32> -> vector<8x32xf32>
    %c0_3 = arith.constant 0 : index
    %c0_4 = arith.constant 0 : index
    %14 = vector.load %arg3[%c0_3, %c0_4] : memref<8x32xf32, #tpu.memory_space<vmem>>, vector<8x32xf32>
    tpu.vector_store %arg3[%c0_3, %c0_4], %13 {strides = array<i32>} : memref<8x32xf32, #tpu.memory_space<vmem>>, vector<8x32xf32>,
    return
  }
  func.func @transform_0(%arg0: i32) -> (i32, i32) {
    %c0_i32 = arith.constant 0 : i32
    %c0_i32_0 = arith.constant 0 : i32
    return %arg0, %c0_i32 : i32, i32
  }
  func.func @transform_1(%arg0: i32) -> (i32, i32) {
    %c0_i32 = arith.constant 0 : i32
    %c0_i32_0 = arith.constant 0 : i32
    %c0_i32_1 = arith.constant 0 : i32
    return %c0_i32, %c0_i32_0 : i32, i32
  }
  func.func @transform_2(%arg0: i32) -> (i32, i32) {
    %c0_i32 = arith.constant 0 : i32
    %c0_i32_0 = arith.constant 0 : i32
    return %arg0, %c0_i32 : i32, i32
  }
}

</mosaic_0001>

<llo_original>
// kernel: tpu_custom_call.1
$region0: #{tpu_custom_call.1}
  #allocation0 [shape = 'u32[]', space=smem, size = 0x4, offset = 0x4, fixed_abs, tag = 'smem constant byte address 0x4 - core index']
  #allocation1 [shape = 'u32[72,128]{1,0:T(1,128)}', space=vmem, size = 0x9000, scoped, tag = 'internal scratch']
  %s0 = inlined_call_operand.vmem [shape: s32[16,2], index: 0, kind: input, shape index: {}]
  %s1 = inlined_call_operand.vmem [shape: bf16[32,32], index: 1, kind: input, shape index: {}]
  %s2 = inlined_call_operand.hbm [shape: f32[16,32], index: 2, kind: output, shape index: {}]
  %s3 = sld [smem:[#allocation0]]
  $region41: #{tpu_custom_call.1} parent=0
    _
  %s5 = ssub.s32 1, %s3
  %s6 = scalar_select 0, %s5, %s3
  $region1: #{tpu_custom_call.1} parent=0
    #allocation2 [shape = 'u8[8192]{0}', space=vmem, size = 0x2000, scoped, tag = 'output window, operand 0']
    #allocation3 [shape = 's32[2]{0}', space=sflag, size = 0x8, scoped, tag = 'scoped memory for tpu_custom_call.1']
    %7 = vsyncpa [#allocation3], 0
    %s8 = scalar_lea.sflag [#allocation3], 1
    %9 = vsyncpa %s8, 0
    loop: start=0, step=1, limit=4
    $region2: #{tpu_custom_call.1} parent=1 // loop_pre_header
      _
    $region3: #{tpu_custom_call.1} parent=1 // loop_header
      %s11 = sphi 0, %s15
      %p12 = scmp.ge.s32.totalorder %s11, 4
      %s21 = sphi 0, %s23
      %s24 = sphi 0, %s21
      %s25 = sphi 0, %s24
      %s41 = sphi 0, %s25
      %s45 = sphi 0, %s45
      %s47 = sphi 0, %s45
      %s48 = sphi 0, %s47
      %s62 = sphi 0, %s48
      %s68 = sphi 0, %s70
      %s71 = sphi 0, %s68
      %s72 = sphi 0, %s71
      %s88 = sphi 0, %s72
    $region4: #{tpu_custom_call.1} parent=1 // loop_header_branch
      %14 = sbr.rel (%p12) target = $region8
    $region5: #{tpu_custom_call.1} parent=1 // loop_body
      %s16 = ssub.s32 %s11, 1
      %s17 = ssub.s32 %s11, 2
      %s18 = sadd.s32 %s11, 1
      %s19 = ssub.s32 %s11, %s18
      %p20 = scmp.eq.s32.totalorder %s19, 0
      %s22 = sadd.s32 %s21, 1
      %s23 = scalar_select %p20, %s21, %s22
      %p26 = pneg %p20
      %p27 = scmp.eq.s32.totalorder %s11, 1
      %p28 = por %p26, %p27
      %p29 = scmp.ne.s32.totalorder %s21, %s24
      %p30 = scmp.eq.s32.totalorder %s11, 0
      %p31 = por %p29, %p30
      %p32 = scmp.ne.s32.totalorder %s21, %s24
      %p33 = scmp.eq.s32.totalorder %s16, 1
      %p34 = por %p32, %p33
      %p35 = scmp.ne.s32.totalorder %s24, %s25
      %p36 = scmp.eq.s32.totalorder %s16, 0
      %p37 = por %p35, %p36
      %p38 = scmp.ne.s32.totalorder %s24, %s25
      %p39 = scmp.eq.s32.totalorder %s17, 1
      %p40 = por %p38, %p39
      %p42 = scmp.ne.s32.totalorder %s25, %s41
      %p43 = scmp.eq.s32.totalorder %s17, 0
      %p44 = por %p42, %p43
      %s46 = sadd.s32 %s45, 1
      %p49 = scmp.eq.s32.totalorder %s11, 1
      %p50 = scmp.ne.s32.totalorder %s45, %s47
      %p51 = scmp.eq.s32.totalorder %s11, 0
      %p52 = por %p50, %p51
      %p53 = scmp.ne.s32.totalorder %s45, %s47
      %p54 = scmp.eq.s32.totalorder %s16, 1
      %p55 = por %p53, %p54
      %p56 = scmp.ne.s32.totalorder %s47, %s48
      %p57 = scmp.eq.s32.totalorder %s16, 0
      %p58 = por %p56, %p57
      %p59 = scmp.ne.s32.totalorder %s47, %s48
      %p60 = scmp.eq.s32.totalorder %s17, 1
      %p61 = por %p59, %p60
      %p63 = scmp.ne.s32.totalorder %s48, %s62
      %p64 = scmp.eq.s32.totalorder %s17, 0
      %p65 = por %p63, %p64
      %s66 = ssub.s32 %s11, %s18
      %p67 = scmp.eq.s32.totalorder %s66, 0
      %s69 = sadd.s32 %s68, 1
      %s70 = scalar_select %p67, %s68, %s69
      %p73 = pneg %p67
      %p74 = scmp.eq.s32.totalorder %s11, 1
      %p75 = por %p73, %p74
      %p76 = scmp.ne.s32.totalorder %s68, %s71
      %p77 = scmp.eq.s32.totalorder %s11, 0
      %p78 = por %p76, %p77
      %p79 = scmp.ne.s32.totalorder %s68, %s71
      %p80 = scmp.eq.s32.totalorder %s16, 1
      %p81 = por %p79, %p80
      %p82 = scmp.ne.s32.totalorder %s71, %s72
      %p83 = scmp.eq.s32.totalorder %s16, 0
      %p84 = por %p82, %p83
      %p85 = scmp.ne.s32.totalorder %s71, %s72
      %p86 = scmp.eq.s32.totalorder %s17, 1
      %p87 = por %p85, %p86
      %p89 = scmp.ne.s32.totalorder %s72, %s88
      %p90 = scmp.eq.s32.totalorder %s17, 0
      %p91 = por %p89, %p90
      %p92 = scmp.le.s32.totalorder 1, %s11
      %p93 = scmp.lt.s32.totalorder %s11, 3
      %p94 = pnand %p92, %p93
      %p95 = pneg %p94
      // Predicated region
      $region9: #{tpu_custom_call.1} parent=5 // pred_check
        _
      $region10: #{tpu_custom_call.1} parent=5 // pred_check_branch
        %97 = sbr.rel (%p94) target = $region12
      $region11: #{tpu_custom_call.1} parent=5 // pred_region
        %s98 = ssub.s32 %s11, 1
        // Predicated region
        $region13: #{tpu_custom_call.1} parent=11 // pred_check
          %p99 = pneg %p58
        $region14: #{tpu_custom_call.1} parent=11 // pred_check_branch
          %101 = sbr.rel (%p99) target = $region16
        $region15: #{tpu_custom_call.1} parent=11 // pred_region
          _
        $region16: #{tpu_custom_call.1} parent=11 // pred_fallthru
          _
      $region12: #{tpu_custom_call.1} parent=5 // pred_fallthru
        _
      %p102 = scmp.lt.s32.totalorder %s11, 2
      // Predicated region
      $region17: #{tpu_custom_call.1} parent=5 // pred_check
        %p103 = pneg %p102
      $region18: #{tpu_custom_call.1} parent=5 // pred_check_branch
        %105 = sbr.rel (%p103) target = $region20
      $region19: #{tpu_custom_call.1} parent=5 // pred_region
        // Predicated region
        $region21: #{tpu_custom_call.1} parent=19 // pred_check
          %p106 = pneg %p31
        $region22: #{tpu_custom_call.1} parent=19 // pred_check_branch
          %108 = sbr.rel (%p106) target = $region24
        $region23: #{tpu_custom_call.1} parent=19 // pred_region
          %p109 = scmp.lt.s32.totalorder %s11, 1
          %s110 = scalar_select %p109, %s11, 1
          %s111 = smul.addr %s110, 8
          %s112 = scalar_lea.vmem %s0, %s111
        $region24: #{tpu_custom_call.1} parent=19 // pred_fallthru
          _
      $region20: #{tpu_custom_call.1} parent=5 // pred_fallthru
        _
      %p113 = scmp.le.s32.totalorder 1, %s11
      %p114 = scmp.lt.s32.totalorder %s11, 3
      %p115 = pnand %p113, %p114
      %p116 = pneg %p115
      // Predicated region
      $region25: #{tpu_custom_call.1} parent=5 // pred_check
        _
      $region26: #{tpu_custom_call.1} parent=5 // pred_check_branch
        %118 = sbr.rel (%p115) target = $region28
      $region27: #{tpu_custom_call.1} parent=5 // pred_region
        %s119 = ssub.s32 %s11, 1
        %p120 = scmp.lt.s32.totalorder %s16, 1
        %s121 = scalar_select %p120, %s16, 1
        %s122 = smul.addr %s121, 8
        %s123 = scalar_lea.vmem %s0, %s122
        %p124 = pneg %p37
        %p125 = pneg %p34
        %p126 = pneg %p58
        %p127 = pneg %p55
        %p128 = pneg %p84
        %p129 = pneg %p81
        %s130 = sand.u32 %s71, 1
        %s131 = scalar_lea.sflag [#allocation3], %s130
        %s132 = sand.u32 %s71, 1
        %s133 = smul.addr %s132, 8
        %s134 = scalar_lea.vmem [#allocation2], %s133
        %p135 = scmp.lt.s32.totalorder %s16, 1
        %s136 = scalar_select %p135, %s16, 1
        %s137 = smul.addr %s136, 8
        %s138 = scalar_lea.vmem %s0, %s137
        %v140 = vld [vmem:[%s138] sm:$0xff]
        %v141 = vlaneseq
        %v142 = vand.u32 %v141, 127
        %143 = vset.pattern.permute.xlu0 0
        %144 = vperm.xlu0 %143, %v140
        %v145 = vpop.permute.xlu0 %144
        %vm146 = vcmp.eq.s32.totalorder %v142, %v145
        %147 = vset.pattern.permute.xlu0 1
        %148 = vperm.xlu0 %147, %v140
        %v149 = vpop.permute.xlu0 %148
        %vm150 = vcmp.eq.s32.totalorder %v142, %v149
        %vm151 = vmor %vm146, %vm150
        %v152 = vsel %vm151, 1, 0
        %v153 = vcvt.s32.f32 %v152
        %v154 = vpack.c.bf16 %v153, %v153
        %v155 = vld [vmem:[%s1] sm:$0xf]
        %v156 = vld [vmem:[%s1 + $0x4] sm:$0xf]
        %v157 = vld [vmem:[%s1 + $0x8] sm:$0xf]
        %v158 = vld [vmem:[%s1 + $0xc] sm:$0xf]
        %v163 = vunpack.c.l.b16 %v155
        %v164 = vunpack.c.l.b16 %v156
        %v165 = vunpack.c.l.b16 %v157
        %v166 = vunpack.c.l.b16 %v158
        %v167 = vpack.c.b16 %v164, %v163
        %v168 = vpack.c.b16 %v166, %v165
        %vm171 = vcmask 261120
        %v173 = vsel %vm171, %v154, 0
        %175 = vmatpush.bf16.msra.mxu0 0
        %176 = vmatpush.bf16.msra.mxu0 0
        %177 = vmatpush.bf16.msra.mxu0 0
        %178 = vmatpush.bf16.msra.mxu0 0
        %179 = vmatpush.bf16.msra.mxu0 0
        %180 = vmatpush.bf16.msra.mxu0 0
        %181 = vmatpush.bf16.msra.mxu0 %v168
        %182 = vmatpush.bf16.msra.mxu0 %v167
        %183 = vmatmul.bf16.gmra.mxu0 %v173
        %v184 = vpop.f32.mrf.mxu0
        %v185 = vadd.f32 0.0, %v184
        %v186 = vpop.f32.mrf.mxu0
        %187 = vdwg.mxu0
        %188 = vst.msk [vmem:[%s134] sm:$0xff] %vm171, %v185
        %s189 = sand.u32 %s71, 1
        %s190 = scalar_lea.sflag [#allocation3], %s189
        %s191 = sand.u32 %s71, 1
        %s192 = smul.addr %s191, 8
        %s193 = scalar_lea.vmem [#allocation2], %s192
        // Predicated region
        $region29: #{tpu_custom_call.1} parent=27 // pred_check
          %p194 = pneg %p81
        $region30: #{tpu_custom_call.1} parent=27 // pred_check_branch
          %196 = sbr.rel (%p194) target = $region32
        $region31: #{tpu_custom_call.1} parent=27 // pred_region
          %198 = vsyncadd %s190, 0
          %s199 = smul.addr %s16, 8
          %s200 = scalar_lea.hbm %s2, %s199
          %s202 = sshll.u32 %s193, 4
          %s203 = int_to_ptr.vmem [resolvable:$true] %s202
          %s204 = sshll.u32 %s200, 4
          %s205 = int_to_ptr.hbm [resolvable:$true] %s204
          %207 = dma.vmem_to_hbm [thread:$0]  %s203, 128, %s205, %s190
        $region32: #{tpu_custom_call.1} parent=27 // pred_fallthru
          _
      $region28: #{tpu_custom_call.1} parent=5 // pred_fallthru
        _
      %p208 = scmp.le.s32.totalorder 2, %s11
      // Predicated region
      $region33: #{tpu_custom_call.1} parent=5 // pred_check
        %p209 = pneg %p208
      $region34: #{tpu_custom_call.1} parent=5 // pred_check_branch
        %211 = sbr.rel (%p209) target = $region36
      $region35: #{tpu_custom_call.1} parent=5 // pred_region
        %s212 = ssub.s32 %s11, 2
        // Predicated region
        $region37: #{tpu_custom_call.1} parent=35 // pred_check
          %p213 = pneg %p87
        $region38: #{tpu_custom_call.1} parent=35 // pred_check_branch
          %215 = sbr.rel (%p213) target = $region40
        $region39: #{tpu_custom_call.1} parent=35 // pred_region
          %s216 = sand.u32 %s72, 1
          %s217 = scalar_lea.sflag [#allocation3], %s216
          %s218 = sand.u32 %s72, 1
          %s219 = smul.addr %s218, 8
          %s220 = scalar_lea.vmem [#allocation2], %s219
          %222 = dma.done %s217, 128
        $region40: #{tpu_custom_call.1} parent=35 // pred_fallthru
          _
      $region36: #{tpu_custom_call.1} parent=5 // pred_fallthru
        _
    $region6: #{tpu_custom_call.1} parent=1 // loop_footer
      %s15 = sadd.s32 1, %s11
    $region7: #{tpu_custom_call.1} parent=1 // loop_footer_branch
      %10 = sbr.rel target = $region3
    $region8: #{tpu_custom_call.1} parent=1 // loop_exit
      _
    %223 = vsyncpa [#allocation3], 1
    %s224 = scalar_lea.sflag [#allocation3], 1
    %225 = vsyncpa %s224, 1

// kernel: tpu_custom_call.1
$region0: #{tpu_custom_call.1}
  #allocation0 [shape = 'u32[]', space=smem, size = 0x4, offset = 0x4, fixed_abs, tag = 'smem constant byte address 0x4 - core index']
  #allocation1 [shape = 'u32[72,128]{1,0:T(1,128)}', space=vmem, size = 0x9000, scoped, tag = 'internal scratch']
  %s0 = inlined_call_operand.vmem [shape: s32[16,2], index: 0, kind: input, shape index: {}]
  %s1 = inlined_call_operand.vmem [shape: bf16[32,32], index: 1, kind: input, shape index: {}]
  %s2 = inlined_call_operand.hbm [shape: f32[16,32], index: 2, kind: output, shape index: {}]
  %s3 = sld [smem:[#allocation0]]
  $region41: #{tpu_custom_call.1} parent=0
    _
  %s5 = ssub.s32 1, %s3
  %s6 = scalar_select 0, %s5, %s3
  $region1: #{tpu_custom_call.1} parent=0
    #allocation2 [shape = 'u8[8192]{0}', space=vmem, size = 0x2000, scoped, tag = 'output window, operand 0']
    #allocation3 [shape = 's32[2]{0}', space=sflag, size = 0x8, scoped, tag = 'scoped memory for tpu_custom_call.1']
    %7 = vsyncpa [#allocation3], 0
    %s8 = scalar_lea.sflag [#allocation3], 1
    %9 = vsyncpa %s8, 0
    loop: start=0, step=1, limit=4
    $region2: #{tpu_custom_call.1} parent=1 // loop_pre_header
      _
    $region3: #{tpu_custom_call.1} parent=1 // loop_header
      %s11 = sphi 0, %s15
      %p12 = scmp.ge.s32.totalorder %s11, 4
      %s21 = sphi 0, %s23
      %s24 = sphi 0, %s21
      %s25 = sphi 0, %s24
      %s41 = sphi 0, %s25
      %s45 = sphi 0, %s45
      %s47 = sphi 0, %s45
      %s48 = sphi 0, %s47
      %s62 = sphi 0, %s48
      %s68 = sphi 0, %s70
      %s71 = sphi 0, %s68
      %s72 = sphi 0, %s71
      %s88 = sphi 0, %s72
    $region4: #{tpu_custom_call.1} parent=1 // loop_header_branch
      %14 = sbr.rel (%p12) target = $region8
    $region5: #{tpu_custom_call.1} parent=1 // loop_body
      %s16 = ssub.s32 %s11, 1
      %s17 = ssub.s32 %s11, 2
      %s18 = sadd.s32 %s11, 1
      %s19 = ssub.s32 %s11, %s18
      %p20 = scmp.eq.s32.totalorder %s19, 0
      %s22 = sadd.s32 %s21, 1
      %s23 = scalar_select %p20, %s21, %s22
      %p26 = pneg %p20
      %p27 = scmp.eq.s32.totalorder %s11, 1
      %p28 = por %p26, %p27
      %p29 = scmp.ne.s32.totalorder %s21, %s24
      %p30 = scmp.eq.s32.totalorder %s11, 0
      %p31 = por %p29, %p30
      %p32 = scmp.ne.s32.totalorder %s21, %s24
      %p33 = scmp.eq.s32.totalorder %s16, 1
      %p34 = por %p32, %p33
      %p35 = scmp.ne.s32.totalorder %s24, %s25
      %p36 = scmp.eq.s32.totalorder %s16, 0
      %p37 = por %p35, %p36
      %p38 = scmp.ne.s32.totalorder %s24, %s25
      %p39 = scmp.eq.s32.totalorder %s17, 1
      %p40 = por %p38, %p39
      %p42 = scmp.ne.s32.totalorder %s25, %s41
      %p43 = scmp.eq.s32.totalorder %s17, 0
      %p44 = por %p42, %p43
      %s46 = sadd.s32 %s45, 1
      %p49 = scmp.eq.s32.totalorder %s11, 1
      %p50 = scmp.ne.s32.totalorder %s45, %s47
      %p51 = scmp.eq.s32.totalorder %s11, 0
      %p52 = por %p50, %p51
      %p53 = scmp.ne.s32.totalorder %s45, %s47
      %p54 = scmp.eq.s32.totalorder %s16, 1
      %p55 = por %p53, %p54
      %p56 = scmp.ne.s32.totalorder %s47, %s48
      %p57 = scmp.eq.s32.totalorder %s16, 0
      %p58 = por %p56, %p57
      %p59 = scmp.ne.s32.totalorder %s47, %s48
      %p60 = scmp.eq.s32.totalorder %s17, 1
      %p61 = por %p59, %p60
      %p63 = scmp.ne.s32.totalorder %s48, %s62
      %p64 = scmp.eq.s32.totalorder %s17, 0
      %p65 = por %p63, %p64
      %s66 = ssub.s32 %s11, %s18
      %p67 = scmp.eq.s32.totalorder %s66, 0
      %s69 = sadd.s32 %s68, 1
      %s70 = scalar_select %p67, %s68, %s69
      %p73 = pneg %p67
      %p74 = scmp.eq.s32.totalorder %s11, 1
      %p75 = por %p73, %p74
      %p76 = scmp.ne.s32.totalorder %s68, %s71
      %p77 = scmp.eq.s32.totalorder %s11, 0
      %p78 = por %p76, %p77
      %p79 = scmp.ne.s32.totalorder %s68, %s71
      %p80 = scmp.eq.s32.totalorder %s16, 1
      %p81 = por %p79, %p80
      %p82 = scmp.ne.s32.totalorder %s71, %s72
      %p83 = scmp.eq.s32.totalorder %s16, 0
      %p84 = por %p82, %p83
      %p85 = scmp.ne.s32.totalorder %s71, %s72
      %p86 = scmp.eq.s32.totalorder %s17, 1
      %p87 = por %p85, %p86
      %p89 = scmp.ne.s32.totalorder %s72, %s88
      %p90 = scmp.eq.s32.totalorder %s17, 0
      %p91 = por %p89, %p90
      %p92 = scmp.le.s32.totalorder 1, %s11
      %p93 = scmp.lt.s32.totalorder %s11, 3
      %p94 = pnand %p92, %p93
      %p95 = pneg %p94
      // Predicated region
      $region9: #{tpu_custom_call.1} parent=5 // pred_check
        _
      $region10: #{tpu_custom_call.1} parent=5 // pred_check_branch
        %97 = sbr.rel (%p94) target = $region12
      $region11: #{tpu_custom_call.1} parent=5 // pred_region
        %s98 = ssub.s32 %s11, 1
        // Predicated region
        $region13: #{tpu_custom_call.1} parent=11 // pred_check
          %p99 = pneg %p58
        $region14: #{tpu_custom_call.1} parent=11 // pred_check_branch
          %101 = sbr.rel (%p99) target = $region16
        $region15: #{tpu_custom_call.1} parent=11 // pred_region
          _
        $region16: #{tpu_custom_call.1} parent=11 // pred_fallthru
          _
      $region12: #{tpu_custom_call.1} parent=5 // pred_fallthru
        _
      %p102 = scmp.lt.s32.totalorder %s11, 2
      // Predicated region
      $region17: #{tpu_custom_call.1} parent=5 // pred_check
        %p103 = pneg %p102
      $region18: #{tpu_custom_call.1} parent=5 // pred_check_branch
        %105 = sbr.rel (%p103) target = $region20
      $region19: #{tpu_custom_call.1} parent=5 // pred_region
        // Predicated region
        $region21: #{tpu_custom_call.1} parent=19 // pred_check
          %p106 = pneg %p31
        $region22: #{tpu_custom_call.1} parent=19 // pred_check_branch
          %108 = sbr.rel (%p106) target = $region24
        $region23: #{tpu_custom_call.1} parent=19 // pred_region
          %p109 = scmp.lt.s32.totalorder %s11, 1
          %s110 = scalar_select %p109, %s11, 1
          %s111 = smul.addr %s110, 8
          %s112 = scalar_lea.vmem %s0, %s111
        $region24: #{tpu_custom_call.1} parent=19 // pred_fallthru
          _
      $region20: #{tpu_custom_call.1} parent=5 // pred_fallthru
        _
      %p113 = scmp.le.s32.totalorder 1, %s11
      %p114 = scmp.lt.s32.totalorder %s11, 3
      %p115 = pnand %p113, %p114
      %p116 = pneg %p115
      // Predicated region
      $region25: #{tpu_custom_call.1} parent=5 // pred_check
        _
      $region26: #{tpu_custom_call.1} parent=5 // pred_check_branch
        %118 = sbr.rel (%p115) target = $region28
      $region27: #{tpu_custom_call.1} parent=5 // pred_region
        %s119 = ssub.s32 %s11, 1
        %p120 = scmp.lt.s32.totalorder %s16, 1
        %s121 = scalar_select %p120, %s16, 1
        %s122 = smul.addr %s121, 8
        %s123 = scalar_lea.vmem %s0, %s122
        %p124 = pneg %p37
        %p125 = pneg %p34
        %p126 = pneg %p58
        %p127 = pneg %p55
        %p128 = pneg %p84
        %p129 = pneg %p81
        %s130 = sand.u32 %s71, 1
        %s131 = scalar_lea.sflag [#allocation3], %s130
        %s132 = sand.u32 %s71, 1
        %s133 = smul.addr %s132, 8
        %s134 = scalar_lea.vmem [#allocation2], %s133
        %p135 = scmp.lt.s32.totalorder %s16, 1
        %s136 = scalar_select %p135, %s16, 1
        %s137 = smul.addr %s136, 8
        %s138 = scalar_lea.vmem %s0, %s137
        %v140 = vld [vmem:[%s138] sm:$0xff]
        %v141 = vlaneseq
        %v142 = vand.u32 %v141, 127
        %143 = vset.pattern.permute.xlu0 0
        %144 = vperm.xlu0 %143, %v140
        %v145 = vpop.permute.xlu0 %144
        %vm146 = vcmp.eq.s32.totalorder %v142, %v145
        %147 = vset.pattern.permute.xlu0 1
        %148 = vperm.xlu0 %147, %v140
        %v149 = vpop.permute.xlu0 %148
        %vm150 = vcmp.eq.s32.totalorder %v142, %v149
        %vm151 = vmor %vm146, %vm150
        %v152 = vsel %vm151, 1, 0
        %v153 = vcvt.s32.f32 %v152
        %v154 = vpack.c.bf16 %v153, %v153
        %v155 = vld [vmem:[%s1] sm:$0xf]
        %v156 = vld [vmem:[%s1 + $0x4] sm:$0xf]
        %v157 = vld [vmem:[%s1 + $0x8] sm:$0xf]
        %v158 = vld [vmem:[%s1 + $0xc] sm:$0xf]
        %v163 = vunpack.c.l.b16 %v155
        %v164 = vunpack.c.l.b16 %v156
        %v165 = vunpack.c.l.b16 %v157
        %v166 = vunpack.c.l.b16 %v158
        %v167 = vpack.c.b16 %v164, %v163
        %v168 = vpack.c.b16 %v166, %v165
        %vm171 = vcmask 261120
        %v173 = vsel %vm171, %v154, 0
        %175 = vmatpush.bf16.msra.mxu0 0
        %176 = vmatpush.bf16.msra.mxu0 0
        %177 = vmatpush.bf16.msra.mxu0 0
        %178 = vmatpush.bf16.msra.mxu0 0
        %179 = vmatpush.bf16.msra.mxu0 0
        %180 = vmatpush.bf16.msra.mxu0 0
        %181 = vmatpush.bf16.msra.mxu0 %v168
        %182 = vmatpush.bf16.msra.mxu0 %v167
        %183 = vmatmul.bf16.gmra.mxu0 %v173
        %v184 = vpop.f32.mrf.mxu0
        %v185 = vadd.f32 0.0, %v184
        %v186 = vpop.f32.mrf.mxu0
        %187 = vdwg.mxu0
        %188 = vst.msk [vmem:[%s134] sm:$0xff] %vm171, %v185
        %s189 = sand.u32 %s71, 1
        %s190 = scalar_lea.sflag [#allocation3], %s189
        %s191 = sand.u32 %s71, 1
        %s192 = smul.addr %s191, 8
        %s193 = scalar_lea.vmem [#allocation2], %s192
        // Predicated region
        $region29: #{tpu_custom_call.1} parent=27 // pred_check
          %p194 = pneg %p81
        $region30: #{tpu_custom_call.1} parent=27 // pred_check_branch
          %196 = sbr.rel (%p194) target = $region32
        $region31: #{tpu_custom_call.1} parent=27 // pred_region
          %198 = vsyncadd %s190, 0
          %s199 = smul.addr %s16, 8
          %s200 = scalar_lea.hbm %s2, %s199
          %s202 = sshll.u32 %s193, 4
          %s203 = int_to_ptr.vmem [resolvable:$true] %s202
          %s204 = sshll.u32 %s200, 4
          %s205 = int_to_ptr.hbm [resolvable:$true] %s204
          %207 = dma.vmem_to_hbm [thread:$0]  %s203, 128, %s205, %s190
        $region32: #{tpu_custom_call.1} parent=27 // pred_fallthru
          _
      $region28: #{tpu_custom_call.1} parent=5 // pred_fallthru
        _
      %p208 = scmp.le.s32.totalorder 2, %s11
      // Predicated region
      $region33: #{tpu_custom_call.1} parent=5 // pred_check
        %p209 = pneg %p208
      $region34: #{tpu_custom_call.1} parent=5 // pred_check_branch
        %211 = sbr.rel (%p209) target = $region36
      $region35: #{tpu_custom_call.1} parent=5 // pred_region
        %s212 = ssub.s32 %s11, 2
        // Predicated region
        $region37: #{tpu_custom_call.1} parent=35 // pred_check
          %p213 = pneg %p87
        $region38: #{tpu_custom_call.1} parent=35 // pred_check_branch
          %215 = sbr.rel (%p213) target = $region40
        $region39: #{tpu_custom_call.1} parent=35 // pred_region
          %s216 = sand.u32 %s72, 1
          %s217 = scalar_lea.sflag [#allocation3], %s216
          %s218 = sand.u32 %s72, 1
          %s219 = smul.addr %s218, 8
          %s220 = scalar_lea.vmem [#allocation2], %s219
          %222 = dma.done %s217, 128
        $region40: #{tpu_custom_call.1} parent=35 // pred_fallthru
          _
      $region36: #{tpu_custom_call.1} parent=5 // pred_fallthru
        _
    $region6: #{tpu_custom_call.1} parent=1 // loop_footer
      %s15 = sadd.s32 1, %s11
    $region7: #{tpu_custom_call.1} parent=1 // loop_footer_branch
      %10 = sbr.rel target = $region3
    $region8: #{tpu_custom_call.1} parent=1 // loop_exit
      _
    %223 = vsyncpa [#allocation3], 1
    %s224 = scalar_lea.sflag [#allocation3], 1
    %225 = vsyncpa %s224, 1

</llo_original>
